<compile_context>
chip_gen: v6e
topology: v6e:2x2x1
jax: 0.10.0
libtpu: 0.0.40
codegen_flags: <defaults>
</compile_context>

<pallas_src>
import jax
import jax.numpy as jnp
from jax.experimental import pallas as pl
from jax.experimental.pallas import tpu as pltpu


def _shortcut_kernel(x_ref, o_ref):
    # x_ref: (Nb, C*Ho, 2W)      lanes [0, W) of each row = the even-H row
    # o_ref: (Nb, C_out*Ho, Wo)  channel-padded, stride-2-subsampled output
    nb, rows_in, w2 = x_ref.shape
    w = w2 // 2
    rows_out, wo = o_ref.shape[1], o_ref.shape[2]
    pad_rows = (rows_out - rows_in) // 2
    dt = o_ref.dtype

    # One-hot column selector sel[k, j] = (k == 2j), built in-register (tiny:
    # (W, Wo) <= (32, 16) for dawnnet) — no operand DMA, no VMEM residency.
    k_idx = jax.lax.broadcasted_iota(jnp.int32, (w, wo), 0)
    j_idx = jax.lax.broadcasted_iota(jnp.int32, (w, wo), 1)
    sel = (k_idx == 2 * j_idx).astype(x_ref.dtype)

    # Zero strips for the channel padding: direct stores, no concatenated temp.
    if pad_rows > 0:
        z = jnp.zeros((nb, pad_rows, wo), dtype=dt)
        o_ref[:, :pad_rows, :] = z
        o_ref[:, pad_rows + rows_in:, :] = z

    # Per-image: drop odd rows with a static lane slice, then pick even
    # columns with an exact one-hot matmul (precision pinned so f32 data is
    # not rounded through bf16 MXU passes).
    for b in range(nb):  # nb is small and static; unrolled
        xe = x_ref[b, :, :w]                              # (C*Ho, W) even rows
        sub = jnp.dot(xe, sel,
                      preferred_element_type=jnp.float32,
                      precision=jax.lax.Precision.HIGHEST)  # (C*Ho, Wo)
        o_ref[b, pad_rows:pad_rows + rows_in, :] = sub.astype(dt)


def _pick_batch_block(n, per_image_vmem_bytes):
    """Images per grid step.

    Big enough to amortize ~0.35 us/step overhead, small enough that the
    double-buffered in+out blocks stay well under the scoped VMEM limit
    (v7x: 32 MiB default / 64 MiB total), and leaving >= 2 grid steps when
    possible so v7x's two TensorCores both get work from the parallel axis.
    """
    budget = 4 << 20  # per buffer set; x2 for double buffering stays <= 8 MiB
    nb = max(1, min(n, budget // max(per_image_vmem_bytes, 1)))
    if n >= 2:
        nb = max(1, min(nb, n // 2))
    while n % nb:      # keep the grid exact (no ragged last block)
        nb -= 1
    return nb


def lambda_layer(x, planes):
    """dawnnet option-A shortcut: x[:, :, ::2, ::2], zero-padded on channels.

    x: (N, C, H, W) -> (N, C + 2*(planes//4), H//2, W//2)
    """
    n, c, h, w = x.shape
    if h % 2 or w % 2:
        # TODO(synk): PyTorch x[:, :, ::2, ::2] yields ceil(H/2) x ceil(W/2);
        # only even spatial sizes (all dawnnet shortcut layers) are handled.
        raise NotImplementedError("odd spatial dims not supported")
    if not jnp.issubdtype(x.dtype, jnp.floating):
        # TODO(synk): integer activations would hit the MXU one-hot dot and
        # v7x's MXU has no integer path; only floating dtypes are supported.
        raise NotImplementedError("only floating dtypes supported")

    pad = planes // 4
    c_out = c + 2 * pad
    ho, wo = h // 2, w // 2
    itemsize = x.dtype.itemsize

    # Free (row-major contiguous) reshape: each row holds an
    # [even-H row | odd-H row] pixel pair of one (channel, output-row) slice.
    x_r = x.reshape(n, c * ho, 2 * w)

    # VMEM-block footprint per image (lanes pad to 128 in VMEM tiles).
    lane_pad = lambda v: ((v + 127) // 128) * 128
    per_image_vmem = (c * ho * lane_pad(2 * w) + c_out * ho * lane_pad(wo)) * itemsize
    nb = _pick_batch_block(n, per_image_vmem)
    grid = (n // nb,)

    cost = pl.CostEstimate(
        flops=2 * n * (c * ho) * w * wo,   # one-hot selection matmul (tiny)
        transcendentals=0,
        bytes_accessed=n * (c * h * w + c_out * ho * wo) * itemsize,
    )

    out_flat = pl.pallas_call(
        _shortcut_kernel,
        out_shape=jax.ShapeDtypeStruct((n, c_out * ho, wo), x.dtype),
        grid=grid,
        in_specs=[
            # whole (Nb, C*Ho, 2W) slab per step; last two block dims are the
            # full array dims -> always a legal, single rectangular DMA.
            pl.BlockSpec((nb, c * ho, 2 * w), lambda i: (i, 0, 0)),
        ],
        out_specs=pl.BlockSpec((nb, c_out * ho, wo), lambda i: (i, 0, 0)),
        compiler_params=pltpu.CompilerParams(
            dimension_semantics=("parallel",)  # batch axis shards across TCs (v7x)
        ),
        cost_estimate=cost,
    )(x_r)

    return out_flat.reshape(n, c_out, ho, wo)


def _reference(x, planes):
    pad = planes // 4
    sub = x[:, :, ::2, ::2]
    return jnp.pad(sub, ((0, 0), (pad, pad), (0, 0), (0, 0)))


if __name__ == "__main__":
    key = jax.random.PRNGKey(0)
    N, C, H, W = 2, 4, 16, 16
    PLANES = 8  # -> pad = 2 channels each side, C_out = 8
    x = jax.random.normal(key, (N, C, H, W), dtype=jnp.float32)

    out = lambda_layer(x, PLANES)
    out = jax.block_until_ready(out)

    ref = _reference(x, PLANES)
    assert out.shape == ref.shape, (out.shape, ref.shape)
    assert jnp.allclose(out, ref, atol=1e-6), "mismatch vs reference"

    print("KERNEL_OK")
</pallas_src>

<mosaic_0001>
module attributes {stable_mosaic.version = 11 : i64} {
  func.func @_shortcut_kernel(%arg0: i32, %arg1: memref<1x32x32xf32, #tpu.memory_space<vmem>>, %arg2: memref<1x64x8xf32, #tpu.memory_space<vmem>>) attributes {dimension_semantics = [#tpu.dimension_semantics<parallel>], iteration_bounds = array<i64: 2>, scalar_prefetch = 0 : i64, scratch_operands = 0 : i64, tpu.core_type = #tpu.core_type<tc>, window_params = [{transform_indices = @transform_0, window_bounds = array<i64: 1, 32, 32>}, {transform_indices = @transform_1, window_bounds = array<i64: 1, 64, 8>}]} {
    %0 = tpu.iota {dimensions = array<i32: 0>} : vector<16x8xi32>
    %1 = tpu.iota {dimensions = array<i32: 1>} : vector<16x8xi32>
    %c2_i32 = arith.constant 2 : i32
    %2 = vector.broadcast %c2_i32 : i32 to vector<16x8xi32>
    %3 = arith.muli %2, %1 : vector<16x8xi32>
    %4 = arith.cmpi eq, %0, %3 : vector<16x8xi32>
    %5 = arith.extui %4 : vector<16x8xi1> to vector<16x8xi32>
    %6 = arith.sitofp %5 : vector<16x8xi32> to vector<16x8xf32>
    %cst = arith.constant 0.000000e+00 : f32
    %7 = vector.broadcast %cst : f32 to vector<1x16x8xf32>
    %c0 = arith.constant 0 : index
    %c0_0 = arith.constant 0 : index
    %c0_1 = arith.constant 0 : index
    %8 = vector.load %arg2[%c0, %c0_0, %c0_1] : memref<1x64x8xf32, #tpu.memory_space<vmem>>, vector<1x16x8xf32>
    tpu.vector_store %arg2[%c0, %c0_0, %c0_1], %7 {strides = array<i32>} : memref<1x64x8xf32, #tpu.memory_space<vmem>>, vector<1x16x8xf32>,
    %c0_2 = arith.constant 0 : index
    %c48 = arith.constant 48 : index
    %c0_3 = arith.constant 0 : index
    %9 = vector.load %arg2[%c0_2, %c48, %c0_3] : memref<1x64x8xf32, #tpu.memory_space<vmem>>, vector<1x16x8xf32>
    tpu.vector_store %arg2[%c0_2, %c48, %c0_3], %7 {strides = array<i32>} : memref<1x64x8xf32, #tpu.memory_space<vmem>>, vector<1x16x8xf32>,
    %c0_4 = arith.constant 0 : index
    %c0_5 = arith.constant 0 : index
    %c0_6 = arith.constant 0 : index
    %10 = vector.load %arg1[%c0_4, %c0_5, %c0_6] : memref<1x32x32xf32, #tpu.memory_space<vmem>>, vector<1x32x16xf32>
    %11 = vector.shape_cast %10 : vector<1x32x16xf32> to vector<32x16xf32>
    %cst_7 = arith.constant dense<0.000000e+00> : vector<32x8xf32>
    %12 = tpu.matmul %11, %6, %cst_7 {dimension_numbers = #tpu.dot_dimension_numbers<[1], [0], [0], [1], [0, 0, 1, 1], [], []>, precision = #tpu.contract_precision<fp32>} : vector<32x16xf32>, vector<16x8xf32>, vector<32x8xf32> -> vector<32x8xf32>
    %c0_8 = arith.constant 0 : index
    %c16 = arith.constant 16 : index
    %c0_9 = arith.constant 0 : index
    %13 = vector.load %arg2[%c0_8, %c16, %c0_9] : memref<1x64x8xf32, #tpu.memory_space<vmem>>, vector<1x32x8xf32>
    %14 = vector.shape_cast %13 : vector<1x32x8xf32> to vector<32x8xf32>
    %15 = vector.shape_cast %12 : vector<32x8xf32> to vector<1x32x8xf32>
    tpu.vector_store %arg2[%c0_8, %c16, %c0_9], %15 {strides = array<i32>} : memref<1x64x8xf32, #tpu.memory_space<vmem>>, vector<1x32x8xf32>,
    return
  }
  func.func @transform_0(%arg0: i32) -> (i32, i32, i32) {
    %c0_i32 = arith.constant 0 : i32
    %c0_i32_0 = arith.constant 0 : i32
    %c0_i32_1 = arith.constant 0 : i32
    return %arg0, %c0_i32, %c0_i32_0 : i32, i32, i32
  }
  func.func @transform_1(%arg0: i32) -> (i32, i32, i32) {
    %c0_i32 = arith.constant 0 : i32
    %c0_i32_0 = arith.constant 0 : i32
    %c0_i32_1 = arith.constant 0 : i32
    return %arg0, %c0_i32, %c0_i32_0 : i32, i32, i32
  }
}

</mosaic_0001>

<llo_original>
// kernel: tpu_custom_call.1
$region0: #{tpu_custom_call.1}
  #allocation0 [shape = 'u32[]', space=smem, size = 0x4, offset = 0x4, fixed_abs, tag = 'smem constant byte address 0x4 - core index']
  #allocation1 [shape = 'u32[144,128]{1,0:T(1,128)}', space=vmem, size = 0x12000, scoped, tag = 'internal scratch']
  %s0 = inlined_call_operand.hbm [shape: f32[2,32,32], index: 0, kind: input, shape index: {}]
  %s1 = inlined_call_operand.vmem [shape: f32[2,64,8], index: 1, kind: output, shape index: {}]
  %s2 = sld [smem:[#allocation0]]
  $region41: #{tpu_custom_call.1} parent=0
    _
  %s4 = ssub.s32 1, %s2
  %s5 = scalar_select 0, %s4, %s2
  $region1: #{tpu_custom_call.1} parent=0
    #allocation2 [shape = 'u8[32768]{0}', space=vmem, size = 0x8000, scoped, tag = 'input window, operand 0']
    #allocation3 [shape = 's32[2]{0}', space=sflag, size = 0x8, scoped, tag = 'scoped memory for tpu_custom_call.1']
    %6 = vsyncpa [#allocation3], 0
    %s7 = scalar_lea.sflag [#allocation3], 1
    %8 = vsyncpa %s7, 0
    loop: start=0, step=1, limit=4
    $region2: #{tpu_custom_call.1} parent=1 // loop_pre_header
      _
    $region3: #{tpu_custom_call.1} parent=1 // loop_header
      %s10 = sphi 0, %s14
      %p11 = scmp.ge.s32.totalorder %s10, 4
      %s20 = sphi 0, %s22
      %s23 = sphi 0, %s20
      %s24 = sphi 0, %s23
      %s40 = sphi 0, %s24
      %s46 = sphi 0, %s48
      %s49 = sphi 0, %s46
      %s50 = sphi 0, %s49
      %s66 = sphi 0, %s50
    $region4: #{tpu_custom_call.1} parent=1 // loop_header_branch
      %13 = sbr.rel (%p11) target = $region8
    $region5: #{tpu_custom_call.1} parent=1 // loop_body
      %s15 = ssub.s32 %s10, 1
      %s16 = ssub.s32 %s10, 2
      %s17 = sadd.s32 %s10, 1
      %s18 = ssub.s32 %s10, %s17
      %p19 = scmp.eq.s32.totalorder %s18, 0
      %s21 = sadd.s32 %s20, 1
      %s22 = scalar_select %p19, %s20, %s21
      %p25 = pneg %p19
      %p26 = scmp.eq.s32.totalorder %s10, 1
      %p27 = por %p25, %p26
      %p28 = scmp.ne.s32.totalorder %s20, %s23
      %p29 = scmp.eq.s32.totalorder %s10, 0
      %p30 = por %p28, %p29
      %p31 = scmp.ne.s32.totalorder %s20, %s23
      %p32 = scmp.eq.s32.totalorder %s15, 1
      %p33 = por %p31, %p32
      %p34 = scmp.ne.s32.totalorder %s23, %s24
      %p35 = scmp.eq.s32.totalorder %s15, 0
      %p36 = por %p34, %p35
      %p37 = scmp.ne.s32.totalorder %s23, %s24
      %p38 = scmp.eq.s32.totalorder %s16, 1
      %p39 = por %p37, %p38
      %p41 = scmp.ne.s32.totalorder %s24, %s40
      %p42 = scmp.eq.s32.totalorder %s16, 0
      %p43 = por %p41, %p42
      %s44 = ssub.s32 %s10, %s17
      %p45 = scmp.eq.s32.totalorder %s44, 0
      %s47 = sadd.s32 %s46, 1
      %s48 = scalar_select %p45, %s46, %s47
      %p51 = pneg %p45
      %p52 = scmp.eq.s32.totalorder %s10, 1
      %p53 = por %p51, %p52
      %p54 = scmp.ne.s32.totalorder %s46, %s49
      %p55 = scmp.eq.s32.totalorder %s10, 0
      %p56 = por %p54, %p55
      %p57 = scmp.ne.s32.totalorder %s46, %s49
      %p58 = scmp.eq.s32.totalorder %s15, 1
      %p59 = por %p57, %p58
      %p60 = scmp.ne.s32.totalorder %s49, %s50
      %p61 = scmp.eq.s32.totalorder %s15, 0
      %p62 = por %p60, %p61
      %p63 = scmp.ne.s32.totalorder %s49, %s50
      %p64 = scmp.eq.s32.totalorder %s16, 1
      %p65 = por %p63, %p64
      %p67 = scmp.ne.s32.totalorder %s50, %s66
      %p68 = scmp.eq.s32.totalorder %s16, 0
      %p69 = por %p67, %p68
      %p70 = scmp.le.s32.totalorder 1, %s10
      %p71 = scmp.lt.s32.totalorder %s10, 3
      %p72 = pnand %p70, %p71
      %p73 = pneg %p72
      // Predicated region
      $region9: #{tpu_custom_call.1} parent=5 // pred_check
        _
      $region10: #{tpu_custom_call.1} parent=5 // pred_check_branch
        %75 = sbr.rel (%p72) target = $region12
      $region11: #{tpu_custom_call.1} parent=5 // pred_region
        %s76 = ssub.s32 %s10, 1
      $region12: #{tpu_custom_call.1} parent=5 // pred_fallthru
        _
      %p77 = scmp.lt.s32.totalorder %s10, 2
      // Predicated region
      $region13: #{tpu_custom_call.1} parent=5 // pred_check
        %p78 = pneg %p77
      $region14: #{tpu_custom_call.1} parent=5 // pred_check_branch
        %80 = sbr.rel (%p78) target = $region16
      $region15: #{tpu_custom_call.1} parent=5 // pred_region
        // Predicated region
        $region17: #{tpu_custom_call.1} parent=15 // pred_check
          %p81 = pneg %p30
        $region18: #{tpu_custom_call.1} parent=15 // pred_check_branch
          %83 = sbr.rel (%p81) target = $region20
        $region19: #{tpu_custom_call.1} parent=15 // pred_region
          %s84 = sand.u32 %s20, 1
          %s85 = scalar_lea.sflag [#allocation3], %s84
          %s86 = sand.u32 %s20, 1
          %s87 = smul.addr %s86, 32
          %s88 = scalar_lea.vmem [#allocation2], %s87
          %s90 = ssub.s32 512, 512
          %91 = vsyncadd %s85, %s90
          %s92 = smul.addr %s10, 4
          %s93 = smul.addr %s92, 128
          %s94 = scalar_lea.hbm %s0, %s93
          %s95 = sshll.u32 %s88, 4
          %s96 = int_to_ptr.vmem [resolvable:$true] %s95
          %101 = dma.hbm_to_vmem [thread:$0]  %s94, 512, %s96, %s85, 128, 128, 8
        $region20: #{tpu_custom_call.1} parent=15 // pred_fallthru
          _
      $region16: #{tpu_custom_call.1} parent=5 // pred_fallthru
        _
      %p102 = scmp.le.s32.totalorder 1, %s10
      %p103 = scmp.lt.s32.totalorder %s10, 3
      %p104 = pnand %p102, %p103
      %p105 = pneg %p104
      // Predicated region
      $region21: #{tpu_custom_call.1} parent=5 // pred_check
        _
      $region22: #{tpu_custom_call.1} parent=5 // pred_check_branch
        %107 = sbr.rel (%p104) target = $region24
      $region23: #{tpu_custom_call.1} parent=5 // pred_region
        %s108 = ssub.s32 %s10, 1
        %s109 = sand.u32 %s23, 1
        %s110 = scalar_lea.sflag [#allocation3], %s109
        %s111 = sand.u32 %s23, 1
        %s112 = smul.addr %s111, 32
        %s113 = scalar_lea.vmem [#allocation2], %s112
        // Predicated region
        $region25: #{tpu_custom_call.1} parent=23 // pred_check
          %p114 = pneg %p36
        $region26: #{tpu_custom_call.1} parent=23 // pred_check_branch
          %116 = sbr.rel (%p114) target = $region28
        $region27: #{tpu_custom_call.1} parent=23 // pred_region
          %117 = dma.done %s110, 512
        $region28: #{tpu_custom_call.1} parent=23 // pred_fallthru
          _
        %s118 = sand.u32 %s23, 1
        %s119 = scalar_lea.sflag [#allocation3], %s118
        %s120 = sand.u32 %s23, 1
        %s121 = smul.addr %s120, 32
        %s122 = scalar_lea.vmem [#allocation2], %s121
        %p123 = pneg %p36
        %p124 = pneg %p33
        %p125 = pneg %p62
        %p126 = pneg %p59
        %p127 = scmp.lt.s32.totalorder %s15, 1
        %s128 = scalar_select %p127, %s15, 1
        %s129 = smul.addr %s128, 8
        %s130 = smul.addr %s129, 8
        %s131 = scalar_lea.vmem %s1, %s130
        %p132 = scmp.lt.s32.totalorder %s15, 1
        %s133 = scalar_select %p132, %s15, 1
        %s134 = smul.addr %s133, 8
        %s135 = smul.addr %s134, 8
        %s136 = scalar_lea.vmem %s1, %s135
        %v137 = vlaneseq
        %v138 = vshrl.u32 %v137, 7
        %v139 = vadd.s32 %v138, 8
        %v140 = vlaneseq
        %v141 = vand.u32 %v140, 127
        %v142 = vmul.u32 %v141, 2
        %vm143 = vcmp.eq.s32.totalorder %v138, %v142
        %vm144 = vcmp.eq.s32.totalorder %v139, %v142
        %v145 = vsel %vm143, 1, 0
        %v146 = vsel %vm144, 1, 0
        %v147 = vcvt.s32.f32 %v145
        %v148 = vcvt.s32.f32 %v146
        %vm149 = vcmask 64512
        %150 = vst.msk [vmem:[%s136] sm:$0xff] %vm149, 0.0
        %151 = vst.msk [vmem:[%s136 + $0x8] sm:$0xff] %vm149, 0.0
        %152 = vst.msk [vmem:[%s136 + $0x30] sm:$0xff] %vm149, 0.0
        %153 = vst.msk [vmem:[%s136 + $0x38] sm:$0xff] %vm149, 0.0
        %v154 = vld [vmem:[%s113] sm:$0xff]
        %v155 = vld [vmem:[%s113 + $0x8] sm:$0xff]
        %v156 = vld [vmem:[%s113 + $0x10] sm:$0xff]
        %v157 = vld [vmem:[%s113 + $0x18] sm:$0xff]
        %vm158 = vcmask 130048
        %v160 = vsel %vm158, %v154, 0
        %v163 = vsel %vm158, %v155, 0
        %v166 = vsel %vm158, %v156, 0
        %v169 = vsel %vm158, %v157, 0
        %171 = vmatprep.subr.mxu0 0.0
        %172 = vmatpush1.msra.mxu0 0.0
        %173 = vmatprep.subr.mxu0 0.0
        %174 = vmatpush1.msra.mxu0 0.0
        %175 = vmatprep.subr.mxu0 0.0
        %176 = vmatpush1.msra.mxu0 0.0
        %177 = vmatprep.subr.mxu0 0.0
        %178 = vmatpush1.msra.mxu0 0.0
        %179 = vmatprep.subr.mxu0 0.0
        %180 = vmatpush1.msra.mxu0 0.0
        %181 = vmatprep.subr.mxu0 0.0
        %182 = vmatpush1.msra.mxu0 0.0
        %183 = vmatprep.subr.mxu0 0.0
        %184 = vmatpush1.msra.mxu0 0.0
        %185 = vmatprep.subr.mxu0 0.0
        %186 = vmatpush1.msra.mxu0 0.0
        %187 = vmatprep.subr.mxu0 0.0
        %188 = vmatpush1.msra.mxu0 0.0
        %189 = vmatprep.subr.mxu0 0.0
        %190 = vmatpush1.msra.mxu0 0.0
        %191 = vmatprep.subr.mxu0 0.0
        %192 = vmatpush1.msra.mxu0 0.0
        %193 = vmatprep.subr.mxu0 0.0
        %194 = vmatpush1.msra.mxu0 0.0
        %195 = vmatprep.subr.mxu0 0.0
        %196 = vmatpush1.msra.mxu0 0.0
        %197 = vmatprep.subr.mxu0 0.0
        %198 = vmatpush1.msra.mxu0 0.0
        %199 = vmatprep.subr.mxu0 0.0
        %v200 = vand.u32 %v148, 4294901760
        %201 = vmatpush1.msra.mxu0 %v200
        %202 = vmatprep.subr.mxu0 0.0
        %v203 = vand.u32 %v147, 4294901760
        %204 = vmatpush1.msra.mxu0 %v203
        %205 = vmatprep.subr.mxu0 0.0
        %206 = vmatpush2.msra.mxu0 0.0
        %207 = vmatprep.subr.mxu0 0.0
        %208 = vmatpush2.msra.mxu0 0.0
        %209 = vmatprep.subr.mxu0 0.0
        %210 = vmatpush2.msra.mxu0 0.0
        %211 = vmatprep.subr.mxu0 0.0
        %212 = vmatpush2.msra.mxu0 0.0
        %213 = vmatprep.subr.mxu0 0.0
        %214 = vmatpush2.msra.mxu0 0.0
        %215 = vmatprep.subr.mxu0 0.0
        %216 = vmatpush2.msra.mxu0 0.0
        %217 = vmatprep.subr.mxu0 0.0
        %218 = vmatpush2.msra.mxu0 0.0
        %219 = vmatprep.subr.mxu0 0.0
        %220 = vmatpush2.msra.mxu0 0.0
        %221 = vmatprep.subr.mxu0 0.0
        %222 = vmatpush2.msra.mxu0 0.0
        %223 = vmatprep.subr.mxu0 0.0
        %224 = vmatpush2.msra.mxu0 0.0
        %225 = vmatprep.subr.mxu0 0.0
        %226 = vmatpush2.msra.mxu0 0.0
        %227 = vmatprep.subr.mxu0 0.0
        %228 = vmatpush2.msra.mxu0 0.0
        %229 = vmatprep.subr.mxu0 0.0
        %230 = vmatpush2.msra.mxu0 0.0
        %231 = vmatprep.subr.mxu0 0.0
        %232 = vmatpush2.msra.mxu0 0.0
        %233 = vmatprep.subr.mxu0 0.0
        %234 = vmatpush2.msra.mxu0 0.0
        %235 = vmatprep.subr.mxu0 0.0
        %236 = vmatpush2.msra.mxu0 0.0
        %237 = vmatprep.mubr.f32.mxu0 0.0
        %v238 = vand.u32 %v160, 4294901760
        %v239 = vsub.f32 %v160, %v238
        %v240 = vand.u32 %v239, 4294901760
        %v241 = vsub.f32 %v239, %v240
        %v242 = vand.u32 %v241, 4294901760
        %243 = vmatmul.mubr.f32.gmra.mxu0 %v242
        %v244 = vpop.f32.mrf.mxu0
        %v245 = vadd.f32 0.0, %v244
        %v246 = vpop.f32.mrf.mxu0
        %247 = vmatprep.mubr.f32.mxu0 0.0
        %v248 = vand.u32 %v163, 4294901760
        %v249 = vsub.f32 %v163, %v248
        %v250 = vand.u32 %v249, 4294901760
        %v251 = vsub.f32 %v249, %v250
        %v252 = vand.u32 %v251, 4294901760
        %253 = vmatmul.mubr.f32.gmra.mxu0 %v252
        %v254 = vpop.f32.mrf.mxu0
        %v255 = vadd.f32 0.0, %v254
        %v256 = vpop.f32.mrf.mxu0
        %257 = vmatprep.mubr.f32.mxu0 0.0
        %v258 = vand.u32 %v166, 4294901760
        %v259 = vsub.f32 %v166, %v258
        %v260 = vand.u32 %v259, 4294901760
        %v261 = vsub.f32 %v259, %v260
        %v262 = vand.u32 %v261, 4294901760
        %263 = vmatmul.mubr.f32.gmra.mxu0 %v262
        %v264 = vpop.f32.mrf.mxu0
        %v265 = vadd.f32 0.0, %v264
        %v266 = vpop.f32.mrf.mxu0
        %267 = vmatprep.mubr.f32.mxu0 0.0
        %v268 = vand.u32 %v169, 4294901760
        %v269 = vsub.f32 %v169, %v268
        %v270 = vand.u32 %v269, 4294901760
        %v271 = vsub.f32 %v269, %v270
        %v272 = vand.u32 %v271, 4294901760
        %273 = vmatmul.mubr.f32.gmra.mxu0 %v272
        %v274 = vpop.f32.mrf.mxu0
        %v275 = vadd.f32 0.0, %v274
        %v276 = vpop.f32.mrf.mxu0
        %277 = vdwg.mxu0
        %278 = vmatprep.subr.mxu0 0.0
        %279 = vmatpush1.msra.mxu0 0.0
        %280 = vmatprep.subr.mxu0 0.0
        %281 = vmatpush1.msra.mxu0 0.0
        %282 = vmatprep.subr.mxu0 0.0
        %283 = vmatpush1.msra.mxu0 0.0
        %284 = vmatprep.subr.mxu0 0.0
        %285 = vmatpush1.msra.mxu0 0.0
        %286 = vmatprep.subr.mxu0 0.0
        %287 = vmatpush1.msra.mxu0 0.0
        %288 = vmatprep.subr.mxu0 0.0
        %289 = vmatpush1.msra.mxu0 0.0
        %290 = vmatprep.subr.mxu0 0.0
        %291 = vmatpush1.msra.mxu0 0.0
        %292 = vmatprep.subr.mxu0 0.0
        %293 = vmatpush1.msra.mxu0 0.0
        %294 = vmatprep.subr.mxu0 0.0
        %295 = vmatpush1.msra.mxu0 0.0
        %296 = vmatprep.subr.mxu0 0.0
        %297 = vmatpush1.msra.mxu0 0.0
        %298 = vmatprep.subr.mxu0 0.0
        %299 = vmatpush1.msra.mxu0 0.0
        %300 = vmatprep.subr.mxu0 0.0
        %301 = vmatpush1.msra.mxu0 0.0
        %302 = vmatprep.subr.mxu0 0.0
        %303 = vmatpush1.msra.mxu0 0.0
        %304 = vmatprep.subr.mxu0 0.0
        %305 = vmatpush1.msra.mxu0 0.0
        %306 = vmatprep.subr.mxu0 0.0
        %v307 = vand.u32 %v148, 4294901760
        %v308 = vsub.f32 %v148, %v307
        %v309 = vand.u32 %v308, 4294901760
        %v310 = vsub.f32 %v308, %v309
        %v311 = vand.u32 %v310, 4294901760
        %312 = vmatpush1.msra.mxu0 %v311
        %313 = vmatprep.subr.mxu0 0.0
        %v314 = vand.u32 %v147, 4294901760
        %v315 = vsub.f32 %v147, %v314
        %v316 = vand.u32 %v315, 4294901760
        %v317 = vsub.f32 %v315, %v316
        %v318 = vand.u32 %v317, 4294901760
        %319 = vmatpush1.msra.mxu0 %v318
        %320 = vmatprep.subr.mxu0 0.0
        %321 = vmatpush2.msra.mxu0 0.0
        %322 = vmatprep.subr.mxu0 0.0
        %323 = vmatpush2.msra.mxu0 0.0
        %324 = vmatprep.subr.mxu0 0.0
        %325 = vmatpush2.msra.mxu0 0.0
        %326 = vmatprep.subr.mxu0 0.0
        %327 = vmatpush2.msra.mxu0 0.0
        %328 = vmatprep.subr.mxu0 0.0
        %329 = vmatpush2.msra.mxu0 0.0
        %330 = vmatprep.subr.mxu0 0.0
        %331 = vmatpush2.msra.mxu0 0.0
        %332 = vmatprep.subr.mxu0 0.0
        %333 = vmatpush2.msra.mxu0 0.0
        %334 = vmatprep.subr.mxu0 0.0
        %335 = vmatpush2.msra.mxu0 0.0
        %336 = vmatprep.subr.mxu0 0.0
        %337 = vmatpush2.msra.mxu0 0.0
        %338 = vmatprep.subr.mxu0 0.0
        %339 = vmatpush2.msra.mxu0 0.0
        %340 = vmatprep.subr.mxu0 0.0
        %341 = vmatpush2.msra.mxu0 0.0
        %342 = vmatprep.subr.mxu0 0.0
        %343 = vmatpush2.msra.mxu0 0.0
        %344 = vmatprep.subr.mxu0 0.0
        %345 = vmatpush2.msra.mxu0 0.0
        %346 = vmatprep.subr.mxu0 0.0
        %347 = vmatpush2.msra.mxu0 0.0
        %348 = vmatprep.subr.mxu0 0.0
        %349 = vmatpush2.msra.mxu0 0.0
        %350 = vmatprep.subr.mxu0 0.0
        %351 = vmatpush2.msra.mxu0 0.0
        %352 = vmatprep.mubr.f32.mxu0 0.0
        %v353 = vand.u32 %v160, 4294901760
        %354 = vmatmul.mubr.f32.gmra.mxu0 %v353
        %v355 = vpop.f32.mrf.mxu0
        %v356 = vadd.f32 %v245, %v355
        %v357 = vpop.f32.mrf.mxu0
        %358 = vmatprep.mubr.f32.mxu0 0.0
        %v359 = vand.u32 %v163, 4294901760
        %360 = vmatmul.mubr.f32.gmra.mxu0 %v359
        %v361 = vpop.f32.mrf.mxu0
        %v362 = vadd.f32 %v255, %v361
        %v363 = vpop.f32.mrf.mxu0
        %364 = vmatprep.mubr.f32.mxu0 0.0
        %v365 = vand.u32 %v166, 4294901760
        %366 = vmatmul.mubr.f32.gmra.mxu0 %v365
        %v367 = vpop.f32.mrf.mxu0
        %v368 = vadd.f32 %v265, %v367
        %v369 = vpop.f32.mrf.mxu0
        %370 = vmatprep.mubr.f32.mxu0 0.0
        %v371 = vand.u32 %v169, 4294901760
        %372 = vmatmul.mubr.f32.gmra.mxu0 %v371
        %v373 = vpop.f32.mrf.mxu0
        %v374 = vadd.f32 %v275, %v373
        %v375 = vpop.f32.mrf.mxu0
        %376 = vdwg.mxu0
        %377 = vmatprep.subr.mxu0 0.0
        %378 = vmatpush1.msra.mxu0 0.0
        %379 = vmatprep.subr.mxu0 0.0
        %380 = vmatpush1.msra.mxu0 0.0
        %381 = vmatprep.subr.mxu0 0.0
        %382 = vmatpush1.msra.mxu0 0.0
        %383 = vmatprep.subr.mxu0 0.0
        %384 = vmatpush1.msra.mxu0 0.0
        %385 = vmatprep.subr.mxu0 0.0
        %386 = vmatpush1.msra.mxu0 0.0
        %387 = vmatprep.subr.mxu0 0.0
        %388 = vmatpush1.msra.mxu0 0.0
        %389 = vmatprep.subr.mxu0 0.0
        %390 = vmatpush1.msra.mxu0 0.0
        %391 = vmatprep.subr.mxu0 0.0
        %392 = vmatpush1.msra.mxu0 0.0
        %393 = vmatprep.subr.mxu0 0.0
        %394 = vmatpush1.msra.mxu0 0.0
        %395 = vmatprep.subr.mxu0 0.0
        %396 = vmatpush1.msra.mxu0 0.0
        %397 = vmatprep.subr.mxu0 0.0
        %398 = vmatpush1.msra.mxu0 0.0
        %399 = vmatprep.subr.mxu0 0.0
        %400 = vmatpush1.msra.mxu0 0.0
        %401 = vmatprep.subr.mxu0 0.0
        %402 = vmatpush1.msra.mxu0 0.0
        %403 = vmatprep.subr.mxu0 0.0
        %404 = vmatpush1.msra.mxu0 0.0
        %405 = vmatprep.subr.mxu0 0.0
        %v406 = vand.u32 %v148, 4294901760
        %v407 = vsub.f32 %v148, %v406
        %408 = vmatpush1.msra.mxu0 %v407
        %409 = vmatprep.subr.mxu0 0.0
        %v410 = vand.u32 %v147, 4294901760
        %v411 = vsub.f32 %v147, %v410
        %412 = vmatpush1.msra.mxu0 %v411
        %413 = vmatprep.subr.mxu0 0.0
        %414 = vmatpush2.msra.mxu0 0.0
        %415 = vmatprep.subr.mxu0 0.0
        %416 = vmatpush2.msra.mxu0 0.0
        %417 = vmatprep.subr.mxu0 0.0
        %418 = vmatpush2.msra.mxu0 0.0
        %419 = vmatprep.subr.mxu0 0.0
        %420 = vmatpush2.msra.mxu0 0.0
        %421 = vmatprep.subr.mxu0 0.0
        %422 = vmatpush2.msra.mxu0 0.0
        %423 = vmatprep.subr.mxu0 0.0
        %424 = vmatpush2.msra.mxu0 0.0
        %425 = vmatprep.subr.mxu0 0.0
        %426 = vmatpush2.msra.mxu0 0.0
        %427 = vmatprep.subr.mxu0 0.0
        %428 = vmatpush2.msra.mxu0 0.0
        %429 = vmatprep.subr.mxu0 0.0
        %430 = vmatpush2.msra.mxu0 0.0
        %431 = vmatprep.subr.mxu0 0.0
        %432 = vmatpush2.msra.mxu0 0.0
        %433 = vmatprep.subr.mxu0 0.0
        %434 = vmatpush2.msra.mxu0 0.0
        %435 = vmatprep.subr.mxu0 0.0
        %436 = vmatpush2.msra.mxu0 0.0
        %437 = vmatprep.subr.mxu0 0.0
        %438 = vmatpush2.msra.mxu0 0.0
        %439 = vmatprep.subr.mxu0 0.0
        %440 = vmatpush2.msra.mxu0 0.0
        %441 = vmatprep.subr.mxu0 0.0
        %442 = vmatpush2.msra.mxu0 0.0
        %443 = vmatprep.subr.mxu0 0.0
        %444 = vmatpush2.msra.mxu0 0.0
        %445 = vmatprep.mubr.f32.mxu0 0.0
        %v446 = vand.u32 %v160, 4294901760
        %v447 = vsub.f32 %v160, %v446
        %448 = vmatmul.mubr.f32.gmra.mxu0 %v447
        %v449 = vpop.f32.mrf.mxu0
        %v450 = vadd.f32 %v356, %v449
        %v451 = vpop.f32.mrf.mxu0
        %452 = vmatprep.mubr.f32.mxu0 0.0
        %v453 = vand.u32 %v163, 4294901760
        %v454 = vsub.f32 %v163, %v453
        %455 = vmatmul.mubr.f32.gmra.mxu0 %v454
        %v456 = vpop.f32.mrf.mxu0
        %v457 = vadd.f32 %v362, %v456
        %v458 = vpop.f32.mrf.mxu0
        %459 = vmatprep.mubr.f32.mxu0 0.0
        %v460 = vand.u32 %v166, 4294901760
        %v461 = vsub.f32 %v166, %v460
        %462 = vmatmul.mubr.f32.gmra.mxu0 %v461
        %v463 = vpop.f32.mrf.mxu0
        %v464 = vadd.f32 %v368, %v463
        %v465 = vpop.f32.mrf.mxu0
        %466 = vmatprep.mubr.f32.mxu0 0.0
        %v467 = vand.u32 %v169, 4294901760
        %v468 = vsub.f32 %v169, %v467
        %469 = vmatmul.mubr.f32.gmra.mxu0 %v468
        %v470 = vpop.f32.mrf.mxu0
        %v471 = vadd.f32 %v374, %v470
        %v472 = vpop.f32.mrf.mxu0
        %473 = vdwg.mxu0
        %474 = vmatprep.subr.mxu0 0.0
        %475 = vmatpush1.msra.mxu0 0.0
        %476 = vmatprep.subr.mxu0 0.0
        %477 = vmatpush1.msra.mxu0 0.0
        %478 = vmatprep.subr.mxu0 0.0
        %479 = vmatpush1.msra.mxu0 0.0
        %480 = vmatprep.subr.mxu0 0.0
        %481 = vmatpush1.msra.mxu0 0.0
        %482 = vmatprep.subr.mxu0 0.0
        %483 = vmatpush1.msra.mxu0 0.0
        %484 = vmatprep.subr.mxu0 0.0
        %485 = vmatpush1.msra.mxu0 0.0
        %486 = vmatprep.subr.mxu0 0.0
        %487 = vmatpush1.msra.mxu0 0.0
        %488 = vmatprep.subr.mxu0 0.0
        %489 = vmatpush1.msra.mxu0 0.0
        %490 = vmatprep.subr.mxu0 0.0
        %491 = vmatpush1.msra.mxu0 0.0
        %492 = vmatprep.subr.mxu0 0.0
        %493 = vmatpush1.msra.mxu0 0.0
        %494 = vmatprep.subr.mxu0 0.0
        %495 = vmatpush1.msra.mxu0 0.0
        %496 = vmatprep.subr.mxu0 0.0
        %497 = vmatpush1.msra.mxu0 0.0
        %498 = vmatprep.subr.mxu0 0.0
        %499 = vmatpush1.msra.mxu0 0.0
        %500 = vmatprep.subr.mxu0 0.0
        %501 = vmatpush1.msra.mxu0 0.0
        %502 = vmatprep.subr.mxu0 0.0
        %v503 = vand.u32 %v148, 4294901760
        %504 = vmatpush1.msra.mxu0 %v503
        %505 = vmatprep.subr.mxu0 0.0
        %v506 = vand.u32 %v147, 4294901760
        %507 = vmatpush1.msra.mxu0 %v506
        %508 = vmatprep.subr.mxu0 0.0
        %509 = vmatpush2.msra.mxu0 0.0
        %510 = vmatprep.subr.mxu0 0.0
        %511 = vmatpush2.msra.mxu0 0.0
        %512 = vmatprep.subr.mxu0 0.0
        %513 = vmatpush2.msra.mxu0 0.0
        %514 = vmatprep.subr.mxu0 0.0
        %515 = vmatpush2.msra.mxu0 0.0
        %516 = vmatprep.subr.mxu0 0.0
        %517 = vmatpush2.msra.mxu0 0.0
        %518 = vmatprep.subr.mxu0 0.0
        %519 = vmatpush2.msra.mxu0 0.0
        %520 = vmatprep.subr.mxu0 0.0
        %521 = vmatpush2.msra.mxu0 0.0
        %522 = vmatprep.subr.mxu0 0.0
        %523 = vmatpush2.msra.mxu0 0.0
        %524 = vmatprep.subr.mxu0 0.0
        %525 = vmatpush2.msra.mxu0 0.0
        %526 = vmatprep.subr.mxu0 0.0
        %527 = vmatpush2.msra.mxu0 0.0
        %528 = vmatprep.subr.mxu0 0.0
        %529 = vmatpush2.msra.mxu0 0.0
        %530 = vmatprep.subr.mxu0 0.0
        %531 = vmatpush2.msra.mxu0 0.0
        %532 = vmatprep.subr.mxu0 0.0
        %533 = vmatpush2.msra.mxu0 0.0
        %534 = vmatprep.subr.mxu0 0.0
        %535 = vmatpush2.msra.mxu0 0.0
        %536 = vmatprep.subr.mxu0 0.0
        %537 = vmatpush2.msra.mxu0 0.0
        %538 = vmatprep.subr.mxu0 0.0
        %539 = vmatpush2.msra.mxu0 0.0
        %540 = vmatprep.mubr.f32.mxu0 0.0
        %v541 = vand.u32 %v160, 4294901760
        %v542 = vsub.f32 %v160, %v541
        %v543 = vand.u32 %v542, 4294901760
        %544 = vmatmul.mubr.f32.gmra.mxu0 %v543
        %v545 = vpop.f32.mrf.mxu0
        %v546 = vadd.f32 %v450, %v545
        %v547 = vpop.f32.mrf.mxu0
        %548 = vmatprep.mubr.f32.mxu0 0.0
        %v549 = vand.u32 %v163, 4294901760
        %v550 = vsub.f32 %v163, %v549
        %v551 = vand.u32 %v550, 4294901760
        %552 = vmatmul.mubr.f32.gmra.mxu0 %v551
        %v553 = vpop.f32.mrf.mxu0
        %v554 = vadd.f32 %v457, %v553
        %v555 = vpop.f32.mrf.mxu0
        %556 = vmatprep.mubr.f32.mxu0 0.0
        %v557 = vand.u32 %v166, 4294901760
        %v558 = vsub.f32 %v166, %v557
        %v559 = vand.u32 %v558, 4294901760
        %560 = vmatmul.mubr.f32.gmra.mxu0 %v559
        %v561 = vpop.f32.mrf.mxu0
        %v562 = vadd.f32 %v464, %v561
        %v563 = vpop.f32.mrf.mxu0
        %564 = vmatprep.mubr.f32.mxu0 0.0
        %v565 = vand.u32 %v169, 4294901760
        %v566 = vsub.f32 %v169, %v565
        %v567 = vand.u32 %v566, 4294901760
        %568 = vmatmul.mubr.f32.gmra.mxu0 %v567
        %v569 = vpop.f32.mrf.mxu0
        %v570 = vadd.f32 %v471, %v569
        %v571 = vpop.f32.mrf.mxu0
        %572 = vdwg.mxu0
        %573 = vmatprep.subr.mxu0 0.0
        %574 = vmatpush1.msra.mxu0 0.0
        %575 = vmatprep.subr.mxu0 0.0
        %576 = vmatpush1.msra.mxu0 0.0
        %577 = vmatprep.subr.mxu0 0.0
        %578 = vmatpush1.msra.mxu0 0.0
        %579 = vmatprep.subr.mxu0 0.0
        %580 = vmatpush1.msra.mxu0 0.0
        %581 = vmatprep.subr.mxu0 0.0
        %582 = vmatpush1.msra.mxu0 0.0
        %583 = vmatprep.subr.mxu0 0.0
        %584 = vmatpush1.msra.mxu0 0.0
        %585 = vmatprep.subr.mxu0 0.0
        %586 = vmatpush1.msra.mxu0 0.0
        %587 = vmatprep.subr.mxu0 0.0
        %588 = vmatpush1.msra.mxu0 0.0
        %589 = vmatprep.subr.mxu0 0.0
        %590 = vmatpush1.msra.mxu0 0.0
        %591 = vmatprep.subr.mxu0 0.0
        %592 = vmatpush1.msra.mxu0 0.0
        %593 = vmatprep.subr.mxu0 0.0
        %594 = vmatpush1.msra.mxu0 0.0
        %595 = vmatprep.subr.mxu0 0.0
        %596 = vmatpush1.msra.mxu0 0.0
        %597 = vmatprep.subr.mxu0 0.0
        %598 = vmatpush1.msra.mxu0 0.0
        %599 = vmatprep.subr.mxu0 0.0
        %600 = vmatpush1.msra.mxu0 0.0
        %601 = vmatprep.subr.mxu0 0.0
        %v602 = vand.u32 %v148, 4294901760
        %v603 = vsub.f32 %v148, %v602
        %v604 = vand.u32 %v603, 4294901760
        %605 = vmatpush1.msra.mxu0 %v604
        %606 = vmatprep.subr.mxu0 0.0
        %v607 = vand.u32 %v147, 4294901760
        %v608 = vsub.f32 %v147, %v607
        %v609 = vand.u32 %v608, 4294901760
        %610 = vmatpush1.msra.mxu0 %v609
        %611 = vmatprep.subr.mxu0 0.0
        %612 = vmatpush2.msra.mxu0 0.0
        %613 = vmatprep.subr.mxu0 0.0
        %614 = vmatpush2.msra.mxu0 0.0
        %615 = vmatprep.subr.mxu0 0.0
        %616 = vmatpush2.msra.mxu0 0.0
        %617 = vmatprep.subr.mxu0 0.0
        %618 = vmatpush2.msra.mxu0 0.0
        %619 = vmatprep.subr.mxu0 0.0
        %620 = vmatpush2.msra.mxu0 0.0
        %621 = vmatprep.subr.mxu0 0.0
        %622 = vmatpush2.msra.mxu0 0.0
        %623 = vmatprep.subr.mxu0 0.0
        %624 = vmatpush2.msra.mxu0 0.0
        %625 = vmatprep.subr.mxu0 0.0
        %626 = vmatpush2.msra.mxu0 0.0
        %627 = vmatprep.subr.mxu0 0.0
        %628 = vmatpush2.msra.mxu0 0.0
        %629 = vmatprep.subr.mxu0 0.0
        %630 = vmatpush2.msra.mxu0 0.0
        %631 = vmatprep.subr.mxu0 0.0
        %632 = vmatpush2.msra.mxu0 0.0
        %633 = vmatprep.subr.mxu0 0.0
        %634 = vmatpush2.msra.mxu0 0.0
        %635 = vmatprep.subr.mxu0 0.0
        %636 = vmatpush2.msra.mxu0 0.0
        %637 = vmatprep.subr.mxu0 0.0
        %638 = vmatpush2.msra.mxu0 0.0
        %639 = vmatprep.subr.mxu0 0.0
        %640 = vmatpush2.msra.mxu0 0.0
        %641 = vmatprep.subr.mxu0 0.0
        %642 = vmatpush2.msra.mxu0 0.0
        %643 = vmatprep.mubr.f32.mxu0 0.0
        %v644 = vand.u32 %v160, 4294901760
        %645 = vmatmul.mubr.f32.gmra.mxu0 %v644
        %v646 = vpop.f32.mrf.mxu0
        %v647 = vadd.f32 %v546, %v646
        %v648 = vpop.f32.mrf.mxu0
        %649 = vmatprep.mubr.f32.mxu0 0.0
        %v650 = vand.u32 %v163, 4294901760
        %651 = vmatmul.mubr.f32.gmra.mxu0 %v650
        %v652 = vpop.f32.mrf.mxu0
        %v653 = vadd.f32 %v554, %v652
        %v654 = vpop.f32.mrf.mxu0
        %655 = vmatprep.mubr.f32.mxu0 0.0
        %v656 = vand.u32 %v166, 4294901760
        %657 = vmatmul.mubr.f32.gmra.mxu0 %v656
        %v658 = vpop.f32.mrf.mxu0
        %v659 = vadd.f32 %v562, %v658
        %v660 = vpop.f32.mrf.mxu0
        %661 = vmatprep.mubr.f32.mxu0 0.0
        %v662 = vand.u32 %v169, 4294901760
        %663 = vmatmul.mubr.f32.gmra.mxu0 %v662
        %v664 = vpop.f32.mrf.mxu0
        %v665 = vadd.f32 %v570, %v664
        %v666 = vpop.f32.mrf.mxu0
        %667 = vdwg.mxu0
        %668 = vmatprep.subr.mxu0 0.0
        %669 = vmatpush1.msra.mxu0 0.0
        %670 = vmatprep.subr.mxu0 0.0
        %671 = vmatpush1.msra.mxu0 0.0
        %672 = vmatprep.subr.mxu0 0.0
        %673 = vmatpush1.msra.mxu0 0.0
        %674 = vmatprep.subr.mxu0 0.0
        %675 = vmatpush1.msra.mxu0 0.0
        %676 = vmatprep.subr.mxu0 0.0
        %677 = vmatpush1.msra.mxu0 0.0
        %678 = vmatprep.subr.mxu0 0.0
        %679 = vmatpush1.msra.mxu0 0.0
        %680 = vmatprep.subr.mxu0 0.0
        %681 = vmatpush1.msra.mxu0 0.0
        %682 = vmatprep.subr.mxu0 0.0
        %683 = vmatpush1.msra.mxu0 0.0
        %684 = vmatprep.subr.mxu0 0.0
        %685 = vmatpush1.msra.mxu0 0.0
        %686 = vmatprep.subr.mxu0 0.0
        %687 = vmatpush1.msra.mxu0 0.0
        %688 = vmatprep.subr.mxu0 0.0
        %689 = vmatpush1.msra.mxu0 0.0
        %690 = vmatprep.subr.mxu0 0.0
        %691 = vmatpush1.msra.mxu0 0.0
        %692 = vmatprep.subr.mxu0 0.0
        %693 = vmatpush1.msra.mxu0 0.0
        %694 = vmatprep.subr.mxu0 0.0
        %695 = vmatpush1.msra.mxu0 0.0
        %696 = vmatprep.subr.mxu0 0.0
        %v697 = vand.u32 %v148, 4294901760
        %698 = vmatpush1.msra.mxu0 %v697
        %699 = vmatprep.subr.mxu0 0.0
        %v700 = vand.u32 %v147, 4294901760
        %701 = vmatpush1.msra.mxu0 %v700
        %702 = vmatprep.subr.mxu0 0.0
        %703 = vmatpush2.msra.mxu0 0.0
        %704 = vmatprep.subr.mxu0 0.0
        %705 = vmatpush2.msra.mxu0 0.0
        %706 = vmatprep.subr.mxu0 0.0
        %707 = vmatpush2.msra.mxu0 0.0
        %708 = vmatprep.subr.mxu0 0.0
        %709 = vmatpush2.msra.mxu0 0.0
        %710 = vmatprep.subr.mxu0 0.0
        %711 = vmatpush2.msra.mxu0 0.0
        %712 = vmatprep.subr.mxu0 0.0
        %713 = vmatpush2.msra.mxu0 0.0
        %714 = vmatprep.subr.mxu0 0.0
        %715 = vmatpush2.msra.mxu0 0.0
        %716 = vmatprep.subr.mxu0 0.0
        %717 = vmatpush2.msra.mxu0 0.0
        %718 = vmatprep.subr.mxu0 0.0
        %719 = vmatpush2.msra.mxu0 0.0
        %720 = vmatprep.subr.mxu0 0.0
        %721 = vmatpush2.msra.mxu0 0.0
        %722 = vmatprep.subr.mxu0 0.0
        %723 = vmatpush2.msra.mxu0 0.0
        %724 = vmatprep.subr.mxu0 0.0
        %725 = vmatpush2.msra.mxu0 0.0
        %726 = vmatprep.subr.mxu0 0.0
        %727 = vmatpush2.msra.mxu0 0.0
        %728 = vmatprep.subr.mxu0 0.0
        %729 = vmatpush2.msra.mxu0 0.0
        %730 = vmatprep.subr.mxu0 0.0
        %731 = vmatpush2.msra.mxu0 0.0
        %732 = vmatprep.subr.mxu0 0.0
        %733 = vmatpush2.msra.mxu0 0.0
        %734 = vmatprep.mubr.f32.mxu0 0.0
        %v735 = vand.u32 %v160, 4294901760
        %736 = vmatmul.mubr.f32.gmra.mxu0 %v735
        %v737 = vpop.f32.mrf.mxu0
        %v738 = vadd.f32 %v647, %v737
        %v739 = vpop.f32.mrf.mxu0
        %740 = vmatprep.mubr.f32.mxu0 0.0
        %v741 = vand.u32 %v163, 4294901760
        %742 = vmatmul.mubr.f32.gmra.mxu0 %v741
        %v743 = vpop.f32.mrf.mxu0
        %v744 = vadd.f32 %v653, %v743
        %v745 = vpop.f32.mrf.mxu0
        %746 = vmatprep.mubr.f32.mxu0 0.0
        %v747 = vand.u32 %v166, 4294901760
        %748 = vmatmul.mubr.f32.gmra.mxu0 %v747
        %v749 = vpop.f32.mrf.mxu0
        %v750 = vadd.f32 %v659, %v749
        %v751 = vpop.f32.mrf.mxu0
        %752 = vmatprep.mubr.f32.mxu0 0.0
        %v753 = vand.u32 %v169, 4294901760
        %754 = vmatmul.mubr.f32.gmra.mxu0 %v753
        %v755 = vpop.f32.mrf.mxu0
        %v756 = vadd.f32 %v665, %v755
        %v757 = vpop.f32.mrf.mxu0
        %758 = vdwg.mxu0
        %759 = vst.msk [vmem:[%s136 + $0x10] sm:$0xff] %vm149, %v738
        %760 = vst.msk [vmem:[%s136 + $0x18] sm:$0xff] %vm149, %v744
        %761 = vst.msk [vmem:[%s136 + $0x20] sm:$0xff] %vm149, %v750
        %762 = vst.msk [vmem:[%s136 + $0x28] sm:$0xff] %vm149, %v756
        %p763 = scmp.lt.s32.totalorder %s15, 1
        %s764 = scalar_select %p763, %s15, 1
        %s765 = smul.addr %s764, 8
        %s766 = smul.addr %s765, 8
        %s767 = scalar_lea.vmem %s1, %s766
        // Predicated region
        $region29: #{tpu_custom_call.1} parent=23 // pred_check
          %p768 = pneg %p59
        $region30: #{tpu_custom_call.1} parent=23 // pred_check_branch
          %770 = sbr.rel (%p768) target = $region32
        $region31: #{tpu_custom_call.1} parent=23 // pred_region
          _
        $region32: #{tpu_custom_call.1} parent=23 // pred_fallthru
          _
      $region24: #{tpu_custom_call.1} parent=5 // pred_fallthru
        _
      %p771 = scmp.le.s32.totalorder 2, %s10
      // Predicated region
      $region33: #{tpu_custom_call.1} parent=5 // pred_check
        %p772 = pneg %p771
      $region34: #{tpu_custom_call.1} parent=5 // pred_check_branch
        %774 = sbr.rel (%p772) target = $region36
      $region35: #{tpu_custom_call.1} parent=5 // pred_region
        %s775 = ssub.s32 %s10, 2
        // Predicated region
        $region37: #{tpu_custom_call.1} parent=35 // pred_check
          %p776 = pneg %p65
        $region38: #{tpu_custom_call.1} parent=35 // pred_check_branch
          %778 = sbr.rel (%p776) target = $region40
        $region39: #{tpu_custom_call.1} parent=35 // pred_region
          %p779 = scmp.lt.s32.totalorder %s16, 1
          %s780 = scalar_select %p779, %s16, 1
          %s781 = smul.addr %s780, 8
          %s782 = smul.addr %s781, 8
          %s783 = scalar_lea.vmem %s1, %s782
        $region40: #{tpu_custom_call.1} parent=35 // pred_fallthru
          _
      $region36: #{tpu_custom_call.1} parent=5 // pred_fallthru
        _
    $region6: #{tpu_custom_call.1} parent=1 // loop_footer
      %s14 = sadd.s32 1, %s10
    $region7: #{tpu_custom_call.1} parent=1 // loop_footer_branch
      %9 = sbr.rel target = $region3
    $region8: #{tpu_custom_call.1} parent=1 // loop_exit
      _
    %784 = vsyncpa [#allocation3], 1
    %s785 = scalar_lea.sflag [#allocation3], 1
    %786 = vsyncpa %s785, 1

</llo_original>
